<compile_context>
chip_gen: v5e
topology: v5e:2x2
jax: 0.10.0
libtpu: 0.0.40
codegen_flags: <defaults>
</compile_context>

<pallas_src>
import functools
import math
from functools import partial

import numpy as np
import jax
import jax.numpy as jnp
from jax.experimental import pallas as pl
from jax.experimental.pallas import tpu as pltpu


# ---------------------------------------------------------------------------
# 1-D linear interpolation weights matching torch.nn.functional.interpolate.
# ---------------------------------------------------------------------------
def _interp_matrix_np(in_size: int, out_size: int, scale, align_corners: bool) -> np.ndarray:
    dst = np.arange(out_size, dtype=np.float64)
    if align_corners:
        ratio = 0.0 if out_size <= 1 else (in_size - 1) / (out_size - 1)
        src = dst * ratio
    else:
        # PyTorch (recompute_scale_factor=False): ratio = 1/scale if scale was
        # given, otherwise in_size/out_size; negative source coords clamp to 0.
        ratio = (1.0 / scale) if (scale is not None and scale > 0) else (in_size / out_size)
        src = np.maximum((dst + 0.5) * ratio - 0.5, 0.0)
    i0 = np.clip(np.floor(src).astype(np.int64), 0, in_size - 1)
    i1 = np.minimum(i0 + 1, in_size - 1)
    w1 = (src - i0).astype(np.float32)
    w0 = (1.0 - w1).astype(np.float32)
    m = np.zeros((out_size, in_size), dtype=np.float32)
    np.add.at(m, (np.arange(out_size), i0), w0)
    np.add.at(m, (np.arange(out_size), i1), w1)
    return m


@functools.lru_cache(maxsize=128)
def _fused_weights(h, w, h_out, w_out, scale_h, scale_w, align_corners, dtype_name):
    """Cached fused separable matrix K[(h*W+w), (o*Wo+p)] = Wh[o,h] * Ww[p,w]."""
    wh = _interp_matrix_np(h, h_out, scale_h, align_corners)
    ww = _interp_matrix_np(w, w_out, scale_w, align_corners)
    k = np.einsum("oh,pw->hwop", wh, ww).reshape(h * w, h_out * w_out)
    return jnp.asarray(k, dtype=jnp.dtype(dtype_name))


@functools.lru_cache(maxsize=128)
def _separable_weights(h, w, h_out, w_out, scale_h, scale_w, align_corners, dtype_name):
    """Cached (W, W_out) and (H, H_out) weight matrices for the two-pass path."""
    wh = _interp_matrix_np(h, h_out, scale_h, align_corners)
    ww = _interp_matrix_np(w, w_out, scale_w, align_corners)
    dt = jnp.dtype(dtype_name)
    return jnp.asarray(ww.T, dtype=dt), jnp.asarray(wh.T, dtype=dt)


# ---------------------------------------------------------------------------
# Generation-aware VMEM budgeting.
# ---------------------------------------------------------------------------
@functools.lru_cache(maxsize=1)
def _vmem_budget():
    """(tile working-set budget, vmem_limit_bytes) derived from the actual part."""
    try:
        info = pltpu.get_tpu_info()
        cap = int(getattr(info, "vmem_capacity_bytes", 64 * 1024 * 1024))
    except Exception:  # unknown / no query available -> conservative (v7x-safe)
        cap = 64 * 1024 * 1024
    if cap >= 120 * 1024 * 1024:            # v5e / v6e: 128 MiB per TensorCore
        return 96 * 1024 * 1024, 112 * 1024 * 1024
    return 44 * 1024 * 1024, 56 * 1024 * 1024   # v7x: 64 MiB per TensorCore


def _round_down(v: int, m: int) -> int:
    return (v // m) * m


def _round_up(v: int, m: int) -> int:
    return ((v + m - 1) // m) * m


def _choose_tiles(rows, kdim, ndim, itemsize, sub, budget):
    """Pick (row tile TB, weight-column tile TN) for a rows x kdim @ kdim x ndim matmul."""
    # Column tile: keep the weight fully resident whenever it fits ~half the budget.
    if 2 * kdim * ndim * itemsize <= budget // 2:
        tn = ndim
    else:
        tn = max(128, _round_down((budget // 4) // max(2 * kdim * itemsize, 1), 128))
        tn = min(tn, ndim)

    # Row tile: double-buffered input + output blocks plus the weight block.
    avail = budget - 2 * kdim * tn * itemsize
    per_row = 2 * (kdim + tn) * itemsize
    tb = max(avail // max(per_row, 1), sub)
    tb = min(tb, 1024)
    tb = _round_down(int(tb), sub)
    if rows >= 128:
        tb = max(tb, 128)          # MXU M-tile floor: never starve the MXU at TB<128
    if tb >= rows:
        tb = rows                  # block dim == full array dim is always legal

    # Megacore: expose >= 2 parallel grid steps when the whole problem is one block.
    if tb >= rows and tn >= ndim:
        half_rows = _round_up((rows + 1) // 2, sub)
        if half_rows < rows and (rows < 128 or half_rows >= 128):
            tb = half_rows
        elif ndim >= 256:
            tn = min(_round_up((ndim + 1) // 2, 128), ndim)
    return tb, tn


# ---------------------------------------------------------------------------
# The Pallas kernel: one lane-dense row-block matmul against a resident weight.
# ---------------------------------------------------------------------------
def _matmul_kernel(x_ref, w_ref, o_ref):
    # x_ref: (TB, K)   flattened planes / rows        (lane-dense, full K)
    # w_ref: (K, TN)   interpolation weights          (resident or 2-way split)
    # o_ref: (TB, TN)  output tile                    (lane-dense)
    o_ref[...] = jnp.dot(
        x_ref[...], w_ref[...], preferred_element_type=jnp.float32
    ).astype(o_ref.dtype)


def _row_matmul(x2d, wmat, out_dtype):
    """out (rows, ndim) = x2d (rows, kdim) @ wmat (kdim, ndim), tiled over rows."""
    rows, kdim = x2d.shape
    ndim = wmat.shape[1]
    itemsize = jnp.dtype(x2d.dtype).itemsize
    sub = 16 if x2d.dtype == jnp.bfloat16 else 8
    budget, vmem_limit = _vmem_budget()
    tb, tn = _choose_tiles(rows, kdim, ndim, itemsize, sub, budget)
    grid_i, grid_j = pl.cdiv(rows, tb), pl.cdiv(ndim, tn)

    # Weight re-reads only happen if both axes are tiled (never in practice here).
    w_reads = grid_i if (grid_j > 1 and grid_i > 1) else 1

    return pl.pallas_call(
        _matmul_kernel,
        out_shape=jax.ShapeDtypeStruct((rows, ndim), out_dtype),
        grid=(grid_i, grid_j),
        in_specs=[
            pl.BlockSpec((tb, kdim), lambda i, j: (i, 0)),   # rows: resident across j
            pl.BlockSpec((kdim, tn), lambda i, j: (0, j)),   # weights: resident / 2-split
        ],
        out_specs=pl.BlockSpec((tb, tn), lambda i, j: (i, j)),
        compiler_params=pltpu.CompilerParams(
            dimension_semantics=("parallel", "parallel"),    # megacore-shardable
            vmem_limit_bytes=vmem_limit,
        ),
        cost_estimate=pl.CostEstimate(
            flops=2 * rows * kdim * ndim,
            transcendentals=0,
            bytes_accessed=(rows * kdim + rows * ndim + w_reads * kdim * ndim) * itemsize,
        ),
    )(x2d, wmat)


# ---------------------------------------------------------------------------
# Public wrapper: PyTorch-equivalent bilinear upsample (NCHW).
# ---------------------------------------------------------------------------
_FUSED_K_MAX_BYTES = 4 * 1024 * 1024   # fused-K path only for tiny planes
_FUSED_MAX_HW = 1024


def _resolve_size(h, w, size, scale_factor):
    if size is not None:
        h_out, w_out = (size, size) if isinstance(size, int) else tuple(size)
        return int(h_out), int(w_out), None, None
    if scale_factor is None:
        raise ValueError("either size or scale_factor must be given")
    if isinstance(scale_factor, (tuple, list)):
        sh, sw = scale_factor
    else:
        sh = sw = scale_factor
    # PyTorch: output_size = floor(input_size * scale_factor)
    return int(math.floor(h * sh)), int(math.floor(w * sw)), float(sh), float(sw)


def upsample_bilinear(x, size=None, scale_factor=None, align_corners=False,
                      allow_bf16=False):
    """Pallas TPU equivalent of the Upsample module's forward (NCHW input)."""
    if x.ndim != 4:
        raise ValueError("expected NCHW input")
    n, c, h, w = x.shape
    h_out, w_out, scale_h, scale_w = _resolve_size(h, w, size, scale_factor)

    nc, hw, hwo = n * c, h * w, h_out * w_out
    if x.dtype == jnp.bfloat16 or allow_bf16:
        compute_dtype = jnp.bfloat16       # full-rate MXU; gated for f32 inputs
    else:
        compute_dtype = jnp.float32
    dtype_name = jnp.dtype(compute_dtype).name
    itemsize = jnp.dtype(compute_dtype).itemsize

    use_fused = (hw <= _FUSED_MAX_HW) and (hw * hwo * itemsize <= _FUSED_K_MAX_BYTES)

    if use_fused:
        # Single matmul over the flattened spatial axis; K is small and resident.
        k = _fused_weights(h, w, h_out, w_out, scale_h, scale_w,
                           bool(align_corners), dtype_name)
        x2d = x.reshape(nc, hw).astype(compute_dtype)
        out2d = _row_matmul(x2d, k, x.dtype)
        return out2d.reshape(n, c, h_out, w_out)

    # Separable two-pass path: ~HW/4x fewer MXU FLOPs, tiny weights.
    wwt, wht = _separable_weights(h, w, h_out, w_out, scale_h, scale_w,
                                  bool(align_corners), dtype_name)
    xc = x.astype(compute_dtype)
    # Pass 1 (width): (N*C*H, W) @ (W, W_out)
    y1 = _row_matmul(xc.reshape(nc * h, w), wwt, compute_dtype)
    # Swap H <-> W_out outside the kernel (plain XLA transpose), then
    # Pass 2 (height): (N*C*W_out, H) @ (H, H_out)
    y1t = y1.reshape(n, c, h, w_out).transpose(0, 1, 3, 2).reshape(nc * w_out, h)
    y2 = _row_matmul(y1t, wht, x.dtype)
    return y2.reshape(n, c, w_out, h_out).transpose(0, 1, 3, 2)


# ---------------------------------------------------------------------------
# Pure-JAX reference (same weight construction, no Pallas) for sanity checks.
# ---------------------------------------------------------------------------
def _upsample_ref(x, size=None, scale_factor=None, align_corners=False):
    n, c, h, w = x.shape
    h_out, w_out, scale_h, scale_w = _resolve_size(h, w, size, scale_factor)
    wh = jnp.asarray(_interp_matrix_np(h, h_out, scale_h, align_corners))
    ww = jnp.asarray(_interp_matrix_np(w, w_out, scale_w, align_corners))
    y = jnp.einsum("oh,nchw->ncow", wh, x.astype(jnp.float32))
    y = jnp.einsum("pw,ncow->ncop", ww, y)
    return y.astype(x.dtype)


if __name__ == "__main__":
    key0, key1, key2 = jax.random.split(jax.random.PRNGKey(0), 3)

    # 1) Primary config (fused path): Upsample(scale_factor=2, mode='bilinear').
    x = jax.random.normal(key0, (2, 4, 16, 16), dtype=jnp.float32)
    up2x = jax.jit(partial(upsample_bilinear, scale_factor=2.0))
    y = jax.block_until_ready(up2x(x))
    assert y.shape == (2, 4, 32, 32), y.shape
    y_ref = _upsample_ref(x, scale_factor=2.0)
    assert jnp.allclose(y, y_ref, atol=1e-5, rtol=1e-5), "mismatch (scale_factor=2)"

    # 2) Explicit non-square size, N*C not a multiple of 8, hwo not a 128-multiple.
    x2 = jax.random.normal(key1, (1, 3, 16, 16), dtype=jnp.float32)
    y2 = jax.block_until_ready(upsample_bilinear(x2, size=(24, 20)))
    assert y2.shape == (1, 3, 24, 20), y2.shape
    y2_ref = _upsample_ref(x2, size=(24, 20))
    assert jnp.allclose(y2, y2_ref, atol=1e-5, rtol=1e-5), "mismatch (size=(24,20))"

    # 3) Larger plane -> separable two-pass path.
    x3 = jax.random.normal(key2, (1, 2, 48, 64), dtype=jnp.float32)
    up2x_big = jax.jit(partial(upsample_bilinear, scale_factor=2.0))
    y3 = jax.block_until_ready(up2x_big(x3))
    assert y3.shape == (1, 2, 96, 128), y3.shape
    y3_ref = _upsample_ref(x3, scale_factor=2.0)
    assert jnp.allclose(y3, y3_ref, atol=1e-5, rtol=1e-5), "mismatch (separable path)"

    print("KERNEL_OK")
</pallas_src>

<mosaic_0001>
module attributes {stable_mosaic.version = 11 : i64} {
  func.func @_matmul_kernel(%arg0: i32, %arg1: i32, %arg2: memref<8x256xf32, #tpu.memory_space<vmem>>, %arg3: memref<256x512xf32, #tpu.memory_space<vmem>>, %arg4: memref<8x512xf32, #tpu.memory_space<vmem>>) attributes {dimension_semantics = [#tpu.dimension_semantics<parallel>, #tpu.dimension_semantics<parallel>], iteration_bounds = array<i64: 1, 2>, scalar_prefetch = 0 : i64, scratch_operands = 0 : i64, tpu.core_type = #tpu.core_type<tc>, window_params = [{transform_indices = @transform_0, window_bounds = array<i64: 8, 256>}, {transform_indices = @transform_1, window_bounds = array<i64: 256, 512>}, {transform_indices = @transform_2, window_bounds = array<i64: 8, 512>}]} {
    %c0 = arith.constant 0 : index
    %c0_0 = arith.constant 0 : index
    %0 = vector.load %arg2[%c0, %c0_0] : memref<8x256xf32, #tpu.memory_space<vmem>>, vector<8x256xf32>
    %c0_1 = arith.constant 0 : index
    %c0_2 = arith.constant 0 : index
    %1 = vector.load %arg3[%c0_1, %c0_2] : memref<256x512xf32, #tpu.memory_space<vmem>>, vector<256x512xf32>
    %cst = arith.constant dense<0.000000e+00> : vector<8x512xf32>
    %2 = tpu.matmul %0, %1, %cst {dimension_numbers = #tpu.dot_dimension_numbers<[1], [0], [0], [1], [0, 0, 1, 1], [], []>} : vector<8x256xf32>, vector<256x512xf32>, vector<8x512xf32> -> vector<8x512xf32>
    %c0_3 = arith.constant 0 : index
    %c0_4 = arith.constant 0 : index
    %3 = vector.load %arg4[%c0_3, %c0_4] : memref<8x512xf32, #tpu.memory_space<vmem>>, vector<8x512xf32>
    tpu.vector_store %arg4[%c0_3, %c0_4], %2 {strides = array<i32>} : memref<8x512xf32, #tpu.memory_space<vmem>>, vector<8x512xf32>,
    return
  }
  func.func @transform_0(%arg0: i32, %arg1: i32) -> (i32, i32) {
    %c0_i32 = arith.constant 0 : i32
    %c0_i32_0 = arith.constant 0 : i32
    return %arg0, %c0_i32 : i32, i32
  }
  func.func @transform_1(%arg0: i32, %arg1: i32) -> (i32, i32) {
    %c0_i32 = arith.constant 0 : i32
    %c0_i32_0 = arith.constant 0 : i32
    return %c0_i32, %arg1 : i32, i32
  }
  func.func @transform_2(%arg0: i32, %arg1: i32) -> (i32, i32) {
    %c0_i32 = arith.constant 0 : i32
    return %arg0, %arg1 : i32, i32
  }
}

</mosaic_0001>

<llo_original>
// kernel: upsample_bilinear.1
$region0: #{upsample_bilinear.1}
  #allocation0 [shape = 'u32[]', space=smem, size = 0x4, offset = 0x4, fixed_abs, tag = 'smem constant byte address 0x4 - core index']
  #allocation1 [shape = 'u32[72,128]{1,0:T(1,128)}', space=vmem, size = 0x9000, scoped, tag = 'internal scratch']
  %s0 = inlined_call_operand.vmem [shape: f32[8,256], index: 0, kind: input, shape index: {}]
  %s1 = inlined_call_operand.hbm [shape: f32[256,1024], index: 1, kind: input, shape index: {}]
  %s2 = inlined_call_operand.vmem [shape: f32[8,1024], index: 2, kind: output, shape index: {}]
  %s3 = sld [smem:[#allocation0]]
  $region45: #{upsample_bilinear.1} parent=0
    _
  %s5 = ssub.s32 1, %s3
  %s6 = scalar_select 0, %s5, %s3
  $region1: #{upsample_bilinear.1} parent=0
    #allocation2 [shape = 'u8[1048576]{0}', space=vmem, size = 0x100000, scoped, tag = 'input window, operand 1']
    #allocation3 [shape = 's32[2]{0}', space=sflag, size = 0x8, scoped, tag = 'scoped memory for upsample_bilinear.1']
    %7 = vsyncpa [#allocation3], 0
    %s8 = scalar_lea.sflag [#allocation3], 1
    %9 = vsyncpa %s8, 0
    loop: start=0, step=1, limit=4
    $region2: #{upsample_bilinear.1} parent=1 // loop_pre_header
      _
    $region3: #{upsample_bilinear.1} parent=1 // loop_header
      %s11 = sphi 0, %s15
      %p12 = scmp.ge.s32.totalorder %s11, 4
      %s18 = sphi 0, %s30
      %s19 = sphi 0, %s26
      %s20 = sphi 0, %s18
      %s21 = sphi 0, %s19
      %s22 = sphi 0, %s20
      %s23 = sphi 0, %s21
      %s33 = sphi 0, %s35
      %s36 = sphi 0, %s33
      %s37 = sphi 0, %s36
      %s53 = sphi 0, %s37
      %s59 = sphi 0, %s61
      %s62 = sphi 0, %s59
      %s63 = sphi 0, %s62
      %s79 = sphi 0, %s63
      %s87 = sphi 0, %s89
      %s90 = sphi 0, %s87
      %s91 = sphi 0, %s90
      %s107 = sphi 0, %s91
    $region4: #{upsample_bilinear.1} parent=1 // loop_header_branch
      %14 = sbr.rel (%p12) target = $region8
    $region5: #{upsample_bilinear.1} parent=1 // loop_body
      %s16 = ssub.s32 %s11, 1
      %s17 = ssub.s32 %s11, 2
      %s24 = sadd.s32 1, %s19
      %p25 = scmp.ge.s32.totalorder %s24, 2
      %s26 = scalar_select %p25, 0, %s24
      %s27 = sadd.s32 1, %s18
      %s28 = scalar_select %p25, %s27, %s18
      %p29 = scmp.ge.s32.totalorder %s28, 1
      %s30 = scalar_select %p29, 0, %s28
      %s31 = ssub.s32 %s18, %s30
      %p32 = scmp.eq.s32.totalorder %s31, 0
      %s34 = sadd.s32 %s33, 1
      %s35 = scalar_select %p32, %s33, %s34
      %p38 = pneg %p32
      %p39 = scmp.eq.s32.totalorder %s11, 1
      %p40 = por %p38, %p39
      %p41 = scmp.ne.s32.totalorder %s33, %s36
      %p42 = scmp.eq.s32.totalorder %s11, 0
      %p43 = por %p41, %p42
      %p44 = scmp.ne.s32.totalorder %s33, %s36
      %p45 = scmp.eq.s32.totalorder %s16, 1
      %p46 = por %p44, %p45
      %p47 = scmp.ne.s32.totalorder %s36, %s37
      %p48 = scmp.eq.s32.totalorder %s16, 0
      %p49 = por %p47, %p48
      %p50 = scmp.ne.s32.totalorder %s36, %s37
      %p51 = scmp.eq.s32.totalorder %s17, 1
      %p52 = por %p50, %p51
      %p54 = scmp.ne.s32.totalorder %s37, %s53
      %p55 = scmp.eq.s32.totalorder %s17, 0
      %p56 = por %p54, %p55
      %s57 = ssub.s32 %s19, %s26
      %p58 = scmp.eq.s32.totalorder %s57, 0
      %s60 = sadd.s32 %s59, 1
      %s61 = scalar_select %p58, %s59, %s60
      %p64 = pneg %p58
      %p65 = scmp.eq.s32.totalorder %s11, 1
      %p66 = por %p64, %p65
      %p67 = scmp.ne.s32.totalorder %s59, %s62
      %p68 = scmp.eq.s32.totalorder %s11, 0
      %p69 = por %p67, %p68
      %p70 = scmp.ne.s32.totalorder %s59, %s62
      %p71 = scmp.eq.s32.totalorder %s16, 1
      %p72 = por %p70, %p71
      %p73 = scmp.ne.s32.totalorder %s62, %s63
      %p74 = scmp.eq.s32.totalorder %s16, 0
      %p75 = por %p73, %p74
      %p76 = scmp.ne.s32.totalorder %s62, %s63
      %p77 = scmp.eq.s32.totalorder %s17, 1
      %p78 = por %p76, %p77
      %p80 = scmp.ne.s32.totalorder %s63, %s79
      %p81 = scmp.eq.s32.totalorder %s17, 0
      %p82 = por %p80, %p81
      %s83 = ssub.s32 %s18, %s30
      %s84 = ssub.s32 %s19, %s26
      %s85 = sor.u32 %s83, %s84
      %p86 = scmp.eq.s32.totalorder %s85, 0
      %s88 = sadd.s32 %s87, 1
      %s89 = scalar_select %p86, %s87, %s88
      %p92 = pneg %p86
      %p93 = scmp.eq.s32.totalorder %s11, 1
      %p94 = por %p92, %p93
      %p95 = scmp.ne.s32.totalorder %s87, %s90
      %p96 = scmp.eq.s32.totalorder %s11, 0
      %p97 = por %p95, %p96
      %p98 = scmp.ne.s32.totalorder %s87, %s90
      %p99 = scmp.eq.s32.totalorder %s16, 1
      %p100 = por %p98, %p99
      %p101 = scmp.ne.s32.totalorder %s90, %s91
      %p102 = scmp.eq.s32.totalorder %s16, 0
      %p103 = por %p101, %p102
      %p104 = scmp.ne.s32.totalorder %s90, %s91
      %p105 = scmp.eq.s32.totalorder %s17, 1
      %p106 = por %p104, %p105
      %p108 = scmp.ne.s32.totalorder %s91, %s107
      %p109 = scmp.eq.s32.totalorder %s17, 0
      %p110 = por %p108, %p109
      %p111 = scmp.le.s32.totalorder 1, %s11
      %p112 = scmp.lt.s32.totalorder %s11, 3
      %p113 = pnand %p111, %p112
      %p114 = pneg %p113
      // Predicated region
      $region9: #{upsample_bilinear.1} parent=5 // pred_check
        _
      $region10: #{upsample_bilinear.1} parent=5 // pred_check_branch
        %116 = sbr.rel (%p113) target = $region12
      $region11: #{upsample_bilinear.1} parent=5 // pred_region
        %s117 = ssub.s32 %s11, 1
        // Predicated region
        $region13: #{upsample_bilinear.1} parent=11 // pred_check
          %p118 = pneg %p49
        $region14: #{upsample_bilinear.1} parent=11 // pred_check_branch
          %120 = sbr.rel (%p118) target = $region16
        $region15: #{upsample_bilinear.1} parent=11 // pred_region
          %p121 = scmp.lt.s32.totalorder %s20, 0
          %s122 = scalar_select %p121, %s20, 0
          %s123 = smul.addr %s122, 2
          %s124 = smul.addr %s123, 8
          %s125 = scalar_lea.vmem %s0, %s124
        $region16: #{upsample_bilinear.1} parent=11 // pred_fallthru
          _
      $region12: #{upsample_bilinear.1} parent=5 // pred_fallthru
        _
      %p126 = scmp.lt.s32.totalorder %s11, 2
      // Predicated region
      $region17: #{upsample_bilinear.1} parent=5 // pred_check
        %p127 = pneg %p126
      $region18: #{upsample_bilinear.1} parent=5 // pred_check_branch
        %129 = sbr.rel (%p127) target = $region20
      $region19: #{upsample_bilinear.1} parent=5 // pred_region
        // Predicated region
        $region21: #{upsample_bilinear.1} parent=19 // pred_check
          %p130 = pneg %p69
        $region22: #{upsample_bilinear.1} parent=19 // pred_check_branch
          %132 = sbr.rel (%p130) target = $region24
        $region23: #{upsample_bilinear.1} parent=19 // pred_region
          %s133 = sand.u32 %s59, 1
          %s134 = scalar_lea.sflag [#allocation3], %s133
          %s135 = sand.u32 %s59, 1
          %s136 = smul.addr %s135, 1024
          %s137 = scalar_lea.vmem [#allocation2], %s136
          %s138 = smul.u32 4, %s19
          %140 = vsyncadd %s134, 0
          %s141 = smul.addr %s138, 8
          %s142 = scalar_lea.hbm %s1, %s141
          %s143 = sshll.u32 %s142, 4
          %s144 = int_to_ptr.hbm [resolvable:$true] %s143
          %s145 = sshll.u32 %s137, 4
          %s146 = int_to_ptr.vmem [resolvable:$true] %s145
          %151 = dma.hbm_to_vmem [thread:$0]  %s144, 16384, %s146, %s134, 1024, 512, 32
        $region24: #{upsample_bilinear.1} parent=19 // pred_fallthru
          _
      $region20: #{upsample_bilinear.1} parent=5 // pred_fallthru
        _
      %p152 = scmp.le.s32.totalorder 1, %s11
      %p153 = scmp.lt.s32.totalorder %s11, 3
      %p154 = pnand %p152, %p153
      %p155 = pneg %p154
      // Predicated region
      $region25: #{upsample_bilinear.1} parent=5 // pred_check
        _
      $region26: #{upsample_bilinear.1} parent=5 // pred_check_branch
        %157 = sbr.rel (%p154) target = $region28
      $region27: #{upsample_bilinear.1} parent=5 // pred_region
        %s158 = ssub.s32 %s11, 1
        %s159 = sand.u32 %s62, 1
        %s160 = scalar_lea.sflag [#allocation3], %s159
        %s161 = sand.u32 %s62, 1
        %s162 = smul.addr %s161, 1024
        %s163 = scalar_lea.vmem [#allocation2], %s162
        // Predicated region
        $region29: #{upsample_bilinear.1} parent=27 // pred_check
          %p164 = pneg %p75
        $region30: #{upsample_bilinear.1} parent=27 // pred_check_branch
          %166 = sbr.rel (%p164) target = $region32
        $region31: #{upsample_bilinear.1} parent=27 // pred_region
          %168 = dma.done %s160, 16384
        $region32: #{upsample_bilinear.1} parent=27 // pred_fallthru
          _
        %p169 = scmp.lt.s32.totalorder %s20, 0
        %s170 = scalar_select %p169, %s20, 0
        %s171 = smul.addr %s170, 2
        %s172 = smul.addr %s171, 8
        %s173 = scalar_lea.vmem %s0, %s172
        %p174 = pneg %p49
        %p175 = pneg %p46
        %s176 = sand.u32 %s62, 1
        %s177 = scalar_lea.sflag [#allocation3], %s176
        %s178 = sand.u32 %s62, 1
        %s179 = smul.addr %s178, 1024
        %s180 = scalar_lea.vmem [#allocation2], %s179
        %p181 = pneg %p75
        %p182 = pneg %p72
        %p183 = pneg %p103
        %p184 = pneg %p100
        %s185 = smul.u32 4, %s21
        %p186 = scmp.lt.s32.totalorder %s20, 0
        %s187 = scalar_select %p186, %s20, 0
        %p188 = scmp.lt.s32.totalorder %s185, 7
        %s189 = scalar_select %p188, %s185, 7
        %s190 = smul.addr %s187, 8
        %s191 = sadd.s32 %s189, %s190
        %s192 = smul.addr %s191, 8
        %s193 = scalar_lea.vmem %s2, %s192
        %p194 = scmp.lt.s32.totalorder %s20, 0
        %s195 = scalar_select %p194, %s20, 0
        %s196 = smul.addr %s195, 2
        %s197 = smul.addr %s196, 8
        %s198 = scalar_lea.vmem %s0, %s197
        %s199 = smul.u32 4, %s21
        %s200 = smul.u32 4, %s21
        %p201 = scmp.lt.s32.totalorder %s20, 0
        %s202 = scalar_select %p201, %s20, 0
        %p203 = scmp.lt.s32.totalorder %s200, 7
        %s204 = scalar_select %p203, %s200, 7
        %s205 = smul.addr %s202, 8
        %s206 = sadd.s32 %s204, %s205
        %s207 = smul.addr %s206, 8
        %s208 = scalar_lea.vmem %s2, %s207
        %s209 = smul.u32 4, %s21
        %v210 = vld [vmem:[%s198] sm:$0xff]
        %v211 = vld [vmem:[%s198 + $0x8] sm:$0xff]
        %v212 = vld [vmem:[%s163] sm:$0xff]
        %v213 = vld [vmem:[%s163 + $0x8] sm:$0xff]
        %v214 = vld [vmem:[%s163 + $0x10] sm:$0xff]
        %v215 = vld [vmem:[%s163 + $0x18] sm:$0xff]
        %v216 = vld [vmem:[%s163 + $0x20] sm:$0xff]
        %v217 = vld [vmem:[%s163 + $0x28] sm:$0xff]
        %v218 = vld [vmem:[%s163 + $0x30] sm:$0xff]
        %v219 = vld [vmem:[%s163 + $0x38] sm:$0xff]
        %v220 = vld [vmem:[%s163 + $0x40] sm:$0xff]
        %v221 = vld [vmem:[%s163 + $0x48] sm:$0xff]
        %v222 = vld [vmem:[%s163 + $0x50] sm:$0xff]
        %v223 = vld [vmem:[%s163 + $0x58] sm:$0xff]
        %v224 = vld [vmem:[%s163 + $0x60] sm:$0xff]
        %v225 = vld [vmem:[%s163 + $0x68] sm:$0xff]
        %v226 = vld [vmem:[%s163 + $0x70] sm:$0xff]
        %v227 = vld [vmem:[%s163 + $0x78] sm:$0xff]
        %v228 = vld [vmem:[%s163 + $0x80] sm:$0xff]
        %v229 = vld [vmem:[%s163 + $0x88] sm:$0xff]
        %v230 = vld [vmem:[%s163 + $0x90] sm:$0xff]
        %v231 = vld [vmem:[%s163 + $0x98] sm:$0xff]
        %v232 = vld [vmem:[%s163 + $0xa0] sm:$0xff]
        %v233 = vld [vmem:[%s163 + $0xa8] sm:$0xff]
        %v234 = vld [vmem:[%s163 + $0xb0] sm:$0xff]
        %v235 = vld [vmem:[%s163 + $0xb8] sm:$0xff]
        %v236 = vld [vmem:[%s163 + $0xc0] sm:$0xff]
        %v237 = vld [vmem:[%s163 + $0xc8] sm:$0xff]
        %v238 = vld [vmem:[%s163 + $0xd0] sm:$0xff]
        %v239 = vld [vmem:[%s163 + $0xd8] sm:$0xff]
        %v240 = vld [vmem:[%s163 + $0xe0] sm:$0xff]
        %v241 = vld [vmem:[%s163 + $0xe8] sm:$0xff]
        %v242 = vld [vmem:[%s163 + $0xf0] sm:$0xff]
        %v243 = vld [vmem:[%s163 + $0xf8] sm:$0xff]
        %v244 = vld [vmem:[%s163 + $0x100] sm:$0xff]
        %v245 = vld [vmem:[%s163 + $0x108] sm:$0xff]
        %v246 = vld [vmem:[%s163 + $0x110] sm:$0xff]
        %v247 = vld [vmem:[%s163 + $0x118] sm:$0xff]
        %v248 = vld [vmem:[%s163 + $0x120] sm:$0xff]
        %v249 = vld [vmem:[%s163 + $0x128] sm:$0xff]
        %v250 = vld [vmem:[%s163 + $0x130] sm:$0xff]
        %v251 = vld [vmem:[%s163 + $0x138] sm:$0xff]
        %v252 = vld [vmem:[%s163 + $0x140] sm:$0xff]
        %v253 = vld [vmem:[%s163 + $0x148] sm:$0xff]
        %v254 = vld [vmem:[%s163 + $0x150] sm:$0xff]
        %v255 = vld [vmem:[%s163 + $0x158] sm:$0xff]
        %v256 = vld [vmem:[%s163 + $0x160] sm:$0xff]
        %v257 = vld [vmem:[%s163 + $0x168] sm:$0xff]
        %v258 = vld [vmem:[%s163 + $0x170] sm:$0xff]
        %v259 = vld [vmem:[%s163 + $0x178] sm:$0xff]
        %v260 = vld [vmem:[%s163 + $0x180] sm:$0xff]
        %v261 = vld [vmem:[%s163 + $0x188] sm:$0xff]
        %v262 = vld [vmem:[%s163 + $0x190] sm:$0xff]
        %v263 = vld [vmem:[%s163 + $0x198] sm:$0xff]
        %v264 = vld [vmem:[%s163 + $0x1a0] sm:$0xff]
        %v265 = vld [vmem:[%s163 + $0x1a8] sm:$0xff]
        %v266 = vld [vmem:[%s163 + $0x1b0] sm:$0xff]
        %v267 = vld [vmem:[%s163 + $0x1b8] sm:$0xff]
        %v268 = vld [vmem:[%s163 + $0x1c0] sm:$0xff]
        %v269 = vld [vmem:[%s163 + $0x1c8] sm:$0xff]
        %v270 = vld [vmem:[%s163 + $0x1d0] sm:$0xff]
        %v271 = vld [vmem:[%s163 + $0x1d8] sm:$0xff]
        %v272 = vld [vmem:[%s163 + $0x1e0] sm:$0xff]
        %v273 = vld [vmem:[%s163 + $0x1e8] sm:$0xff]
        %v274 = vld [vmem:[%s163 + $0x1f0] sm:$0xff]
        %v275 = vld [vmem:[%s163 + $0x1f8] sm:$0xff]
        %v276 = vld [vmem:[%s163 + $0x200] sm:$0xff]
        %v277 = vld [vmem:[%s163 + $0x208] sm:$0xff]
        %v278 = vld [vmem:[%s163 + $0x210] sm:$0xff]
        %v279 = vld [vmem:[%s163 + $0x218] sm:$0xff]
        %v280 = vld [vmem:[%s163 + $0x220] sm:$0xff]
        %v281 = vld [vmem:[%s163 + $0x228] sm:$0xff]
        %v282 = vld [vmem:[%s163 + $0x230] sm:$0xff]
        %v283 = vld [vmem:[%s163 + $0x238] sm:$0xff]
        %v284 = vld [vmem:[%s163 + $0x240] sm:$0xff]
        %v285 = vld [vmem:[%s163 + $0x248] sm:$0xff]
        %v286 = vld [vmem:[%s163 + $0x250] sm:$0xff]
        %v287 = vld [vmem:[%s163 + $0x258] sm:$0xff]
        %v288 = vld [vmem:[%s163 + $0x260] sm:$0xff]
        %v289 = vld [vmem:[%s163 + $0x268] sm:$0xff]
        %v290 = vld [vmem:[%s163 + $0x270] sm:$0xff]
        %v291 = vld [vmem:[%s163 + $0x278] sm:$0xff]
        %v292 = vld [vmem:[%s163 + $0x280] sm:$0xff]
        %v293 = vld [vmem:[%s163 + $0x288] sm:$0xff]
        %v294 = vld [vmem:[%s163 + $0x290] sm:$0xff]
        %v295 = vld [vmem:[%s163 + $0x298] sm:$0xff]
        %v296 = vld [vmem:[%s163 + $0x2a0] sm:$0xff]
        %v297 = vld [vmem:[%s163 + $0x2a8] sm:$0xff]
        %v298 = vld [vmem:[%s163 + $0x2b0] sm:$0xff]
        %v299 = vld [vmem:[%s163 + $0x2b8] sm:$0xff]
        %v300 = vld [vmem:[%s163 + $0x2c0] sm:$0xff]
        %v301 = vld [vmem:[%s163 + $0x2c8] sm:$0xff]
        %v302 = vld [vmem:[%s163 + $0x2d0] sm:$0xff]
        %v303 = vld [vmem:[%s163 + $0x2d8] sm:$0xff]
        %v304 = vld [vmem:[%s163 + $0x2e0] sm:$0xff]
        %v305 = vld [vmem:[%s163 + $0x2e8] sm:$0xff]
        %v306 = vld [vmem:[%s163 + $0x2f0] sm:$0xff]
        %v307 = vld [vmem:[%s163 + $0x2f8] sm:$0xff]
        %v308 = vld [vmem:[%s163 + $0x300] sm:$0xff]
        %v309 = vld [vmem:[%s163 + $0x308] sm:$0xff]
        %v310 = vld [vmem:[%s163 + $0x310] sm:$0xff]
        %v311 = vld [vmem:[%s163 + $0x318] sm:$0xff]
        %v312 = vld [vmem:[%s163 + $0x320] sm:$0xff]
        %v313 = vld [vmem:[%s163 + $0x328] sm:$0xff]
        %v314 = vld [vmem:[%s163 + $0x330] sm:$0xff]
        %v315 = vld [vmem:[%s163 + $0x338] sm:$0xff]
        %v316 = vld [vmem:[%s163 + $0x340] sm:$0xff]
        %v317 = vld [vmem:[%s163 + $0x348] sm:$0xff]
        %v318 = vld [vmem:[%s163 + $0x350] sm:$0xff]
        %v319 = vld [vmem:[%s163 + $0x358] sm:$0xff]
        %v320 = vld [vmem:[%s163 + $0x360] sm:$0xff]
        %v321 = vld [vmem:[%s163 + $0x368] sm:$0xff]
        %v322 = vld [vmem:[%s163 + $0x370] sm:$0xff]
        %v323 = vld [vmem:[%s163 + $0x378] sm:$0xff]
        %v324 = vld [vmem:[%s163 + $0x380] sm:$0xff]
        %v325 = vld [vmem:[%s163 + $0x388] sm:$0xff]
        %v326 = vld [vmem:[%s163 + $0x390] sm:$0xff]
        %v327 = vld [vmem:[%s163 + $0x398] sm:$0xff]
        %v328 = vld [vmem:[%s163 + $0x3a0] sm:$0xff]
        %v329 = vld [vmem:[%s163 + $0x3a8] sm:$0xff]
        %v330 = vld [vmem:[%s163 + $0x3b0] sm:$0xff]
        %v331 = vld [vmem:[%s163 + $0x3b8] sm:$0xff]
        %v332 = vld [vmem:[%s163 + $0x3c0] sm:$0xff]
        %v333 = vld [vmem:[%s163 + $0x3c8] sm:$0xff]
        %v334 = vld [vmem:[%s163 + $0x3d0] sm:$0xff]
        %v335 = vld [vmem:[%s163 + $0x3d8] sm:$0xff]
        %v336 = vld [vmem:[%s163 + $0x3e0] sm:$0xff]
        %v337 = vld [vmem:[%s163 + $0x3e8] sm:$0xff]
        %v338 = vld [vmem:[%s163 + $0x3f0] sm:$0xff]
        %v339 = vld [vmem:[%s163 + $0x3f8] sm:$0xff]
        %340 = vmatpush.msra.mxu0 %v272
        %341 = vmatpush.msra.mxu0 %v268
        %342 = vmatpush.msra.mxu0 %v264
        %343 = vmatpush.msra.mxu0 %v260
        %344 = vmatpush.msra.mxu0 %v256
        %345 = vmatpush.msra.mxu0 %v252
        %346 = vmatpush.msra.mxu0 %v248
        %347 = vmatpush.msra.mxu0 %v244
        %348 = vmatpush.msra.mxu0 %v240
        %349 = vmatpush.msra.mxu0 %v236
        %350 = vmatpush.msra.mxu0 %v232
        %351 = vmatpush.msra.mxu0 %v228
        %352 = vmatpush.msra.mxu0 %v224
        %353 = vmatpush.msra.mxu0 %v220
        %354 = vmatpush.msra.mxu0 %v216
        %355 = vmatpush.msra.mxu0 %v212
        %356 = vmatmul.f32.gmra.mxu0 %v210
        %v357 = vpop.f32.mrf.mxu0
        %v358 = vadd.f32 0.0, %v357
        %359 = vdwg.mxu0
        %360 = vmatpush.msra.mxu0 %v336
        %361 = vmatpush.msra.mxu0 %v332
        %362 = vmatpush.msra.mxu0 %v328
        %363 = vmatpush.msra.mxu0 %v324
        %364 = vmatpush.msra.mxu0 %v320
        %365 = vmatpush.msra.mxu0 %v316
        %366 = vmatpush.msra.mxu0 %v312
        %367 = vmatpush.msra.mxu0 %v308
        %368 = vmatpush.msra.mxu0 %v304
        %369 = vmatpush.msra.mxu0 %v300
        %370 = vmatpush.msra.mxu0 %v296
        %371 = vmatpush.msra.mxu0 %v292
        %372 = vmatpush.msra.mxu0 %v288
        %373 = vmatpush.msra.mxu0 %v284
        %374 = vmatpush.msra.mxu0 %v280
        %375 = vmatpush.msra.mxu0 %v276
        %376 = vmatmul.f32.gmra.mxu0 %v211
        %v377 = vpop.f32.mrf.mxu0
        %v378 = vadd.f32 %v358, %v377
        %379 = vdwg.mxu0
        %380 = vmatpush.msra.mxu0 %v273
        %381 = vmatpush.msra.mxu0 %v269
        %382 = vmatpush.msra.mxu0 %v265
        %383 = vmatpush.msra.mxu0 %v261
        %384 = vmatpush.msra.mxu0 %v257
        %385 = vmatpush.msra.mxu0 %v253
        %386 = vmatpush.msra.mxu0 %v249
        %387 = vmatpush.msra.mxu0 %v245
        %388 = vmatpush.msra.mxu0 %v241
        %389 = vmatpush.msra.mxu0 %v237
        %390 = vmatpush.msra.mxu0 %v233
        %391 = vmatpush.msra.mxu0 %v229
        %392 = vmatpush.msra.mxu0 %v225
        %393 = vmatpush.msra.mxu0 %v221
        %394 = vmatpush.msra.mxu0 %v217
        %395 = vmatpush.msra.mxu0 %v213
        %396 = vmatmul.f32.gmra.mxu0 %v210
        %v397 = vpop.f32.mrf.mxu0
        %v398 = vadd.f32 0.0, %v397
        %399 = vdwg.mxu0
        %400 = vmatpush.msra.mxu0 %v337
        %401 = vmatpush.msra.mxu0 %v333
        %402 = vmatpush.msra.mxu0 %v329
        %403 = vmatpush.msra.mxu0 %v325
        %404 = vmatpush.msra.mxu0 %v321
        %405 = vmatpush.msra.mxu0 %v317
        %406 = vmatpush.msra.mxu0 %v313
        %407 = vmatpush.msra.mxu0 %v309
        %408 = vmatpush.msra.mxu0 %v305
        %409 = vmatpush.msra.mxu0 %v301
        %410 = vmatpush.msra.mxu0 %v297
        %411 = vmatpush.msra.mxu0 %v293
        %412 = vmatpush.msra.mxu0 %v289
        %413 = vmatpush.msra.mxu0 %v285
        %414 = vmatpush.msra.mxu0 %v281
        %415 = vmatpush.msra.mxu0 %v277
        %416 = vmatmul.f32.gmra.mxu0 %v211
        %v417 = vpop.f32.mrf.mxu0
        %v418 = vadd.f32 %v398, %v417
        %419 = vdwg.mxu0
        %420 = vmatpush.msra.mxu0 %v274
        %421 = vmatpush.msra.mxu0 %v270
        %422 = vmatpush.msra.mxu0 %v266
        %423 = vmatpush.msra.mxu0 %v262
        %424 = vmatpush.msra.mxu0 %v258
        %425 = vmatpush.msra.mxu0 %v254
        %426 = vmatpush.msra.mxu0 %v250
        %427 = vmatpush.msra.mxu0 %v246
        %428 = vmatpush.msra.mxu0 %v242
        %429 = vmatpush.msra.mxu0 %v238
        %430 = vmatpush.msra.mxu0 %v234
        %431 = vmatpush.msra.mxu0 %v230
        %432 = vmatpush.msra.mxu0 %v226
        %433 = vmatpush.msra.mxu0 %v222
        %434 = vmatpush.msra.mxu0 %v218
        %435 = vmatpush.msra.mxu0 %v214
        %436 = vmatmul.f32.gmra.mxu0 %v210
        %v437 = vpop.f32.mrf.mxu0
        %v438 = vadd.f32 0.0, %v437
        %439 = vdwg.mxu0
        %440 = vmatpush.msra.mxu0 %v338
        %441 = vmatpush.msra.mxu0 %v334
        %442 = vmatpush.msra.mxu0 %v330
        %443 = vmatpush.msra.mxu0 %v326
        %444 = vmatpush.msra.mxu0 %v322
        %445 = vmatpush.msra.mxu0 %v318
        %446 = vmatpush.msra.mxu0 %v314
        %447 = vmatpush.msra.mxu0 %v310
        %448 = vmatpush.msra.mxu0 %v306
        %449 = vmatpush.msra.mxu0 %v302
        %450 = vmatpush.msra.mxu0 %v298
        %451 = vmatpush.msra.mxu0 %v294
        %452 = vmatpush.msra.mxu0 %v290
        %453 = vmatpush.msra.mxu0 %v286
        %454 = vmatpush.msra.mxu0 %v282
        %455 = vmatpush.msra.mxu0 %v278
        %456 = vmatmul.f32.gmra.mxu0 %v211
        %v457 = vpop.f32.mrf.mxu0
        %v458 = vadd.f32 %v438, %v457
        %459 = vdwg.mxu0
        %460 = vmatpush.msra.mxu0 %v275
        %461 = vmatpush.msra.mxu0 %v271
        %462 = vmatpush.msra.mxu0 %v267
        %463 = vmatpush.msra.mxu0 %v263
        %464 = vmatpush.msra.mxu0 %v259
        %465 = vmatpush.msra.mxu0 %v255
        %466 = vmatpush.msra.mxu0 %v251
        %467 = vmatpush.msra.mxu0 %v247
        %468 = vmatpush.msra.mxu0 %v243
        %469 = vmatpush.msra.mxu0 %v239
        %470 = vmatpush.msra.mxu0 %v235
        %471 = vmatpush.msra.mxu0 %v231
        %472 = vmatpush.msra.mxu0 %v227
        %473 = vmatpush.msra.mxu0 %v223
        %474 = vmatpush.msra.mxu0 %v219
        %475 = vmatpush.msra.mxu0 %v215
        %476 = vmatmul.f32.gmra.mxu0 %v210
        %v477 = vpop.f32.mrf.mxu0
        %v478 = vadd.f32 0.0, %v477
        %479 = vdwg.mxu0
        %480 = vmatpush.msra.mxu0 %v339
        %481 = vmatpush.msra.mxu0 %v335
        %482 = vmatpush.msra.mxu0 %v331
        %483 = vmatpush.msra.mxu0 %v327
        %484 = vmatpush.msra.mxu0 %v323
        %485 = vmatpush.msra.mxu0 %v319
        %486 = vmatpush.msra.mxu0 %v315
        %487 = vmatpush.msra.mxu0 %v311
        %488 = vmatpush.msra.mxu0 %v307
        %489 = vmatpush.msra.mxu0 %v303
        %490 = vmatpush.msra.mxu0 %v299
        %491 = vmatpush.msra.mxu0 %v295
        %492 = vmatpush.msra.mxu0 %v291
        %493 = vmatpush.msra.mxu0 %v287
        %494 = vmatpush.msra.mxu0 %v283
        %495 = vmatpush.msra.mxu0 %v279
        %496 = vmatmul.f32.gmra.mxu0 %v211
        %v497 = vpop.f32.mrf.mxu0
        %v498 = vadd.f32 %v478, %v497
        %499 = vdwg.mxu0
        %500 = vst [vmem:[%s208] sm:$0xff] %v378
        %501 = vst [vmem:[%s208 + $0x8] sm:$0xff] %v418
        %502 = vst [vmem:[%s208 + $0x10] sm:$0xff] %v458
        %503 = vst [vmem:[%s208 + $0x18] sm:$0xff] %v498
        %s504 = smul.u32 4, %s21
        %p505 = scmp.lt.s32.totalorder %s20, 0
        %s506 = scalar_select %p505, %s20, 0
        %p507 = scmp.lt.s32.totalorder %s504, 7
        %s508 = scalar_select %p507, %s504, 7
        %s509 = smul.addr %s506, 8
        %s510 = sadd.s32 %s508, %s509
        %s511 = smul.addr %s510, 8
        %s512 = scalar_lea.vmem %s2, %s511
        // Predicated region
        $region33: #{upsample_bilinear.1} parent=27 // pred_check
          %p513 = pneg %p100
        $region34: #{upsample_bilinear.1} parent=27 // pred_check_branch
          %515 = sbr.rel (%p513) target = $region36
        $region35: #{upsample_bilinear.1} parent=27 // pred_region
          %s516 = smul.u32 4, %s21
        $region36: #{upsample_bilinear.1} parent=27 // pred_fallthru
          _
      $region28: #{upsample_bilinear.1} parent=5 // pred_fallthru
        _
      %p517 = scmp.le.s32.totalorder 2, %s11
      // Predicated region
      $region37: #{upsample_bilinear.1} parent=5 // pred_check
        %p518 = pneg %p517
      $region38: #{upsample_bilinear.1} parent=5 // pred_check_branch
        %520 = sbr.rel (%p518) target = $region40
      $region39: #{upsample_bilinear.1} parent=5 // pred_region
        %s521 = ssub.s32 %s11, 2
        // Predicated region
        $region41: #{upsample_bilinear.1} parent=39 // pred_check
          %p522 = pneg %p106
        $region42: #{upsample_bilinear.1} parent=39 // pred_check_branch
          %524 = sbr.rel (%p522) target = $region44
        $region43: #{upsample_bilinear.1} parent=39 // pred_region
          %s525 = smul.u32 4, %s23
          %p526 = scmp.lt.s32.totalorder %s22, 0
          %s527 = scalar_select %p526, %s22, 0
          %p528 = scmp.lt.s32.totalorder %s525, 7
          %s529 = scalar_select %p528, %s525, 7
          %s530 = smul.addr %s527, 8
          %s531 = sadd.s32 %s529, %s530
          %s532 = smul.addr %s531, 8
          %s533 = scalar_lea.vmem %s2, %s532
        $region44: #{upsample_bilinear.1} parent=39 // pred_fallthru
          _
      $region40: #{upsample_bilinear.1} parent=5 // pred_fallthru
        _
    $region6: #{upsample_bilinear.1} parent=1 // loop_footer
      %s15 = sadd.s32 1, %s11
    $region7: #{upsample_bilinear.1} parent=1 // loop_footer_branch
      %10 = sbr.rel target = $region3
    $region8: #{upsample_bilinear.1} parent=1 // loop_exit
      _
    %534 = vsyncpa [#allocation3], 1
    %s535 = scalar_lea.sflag [#allocation3], 1
    %536 = vsyncpa %s535, 1

</llo_original>
